<compile_context>
chip_gen: v6e
topology: v6e:2x2x1
jax: 0.10.0
libtpu: 0.0.40
codegen_flags: <defaults>
</compile_context>

<pallas_src>
import numpy as np
import jax
import jax.numpy as jnp
from jax.experimental import pallas as pl
from jax.experimental.pallas import tpu as pltpu


def _round_up(a, m):
    return -(-a // m) * m


# ---------------------------------------------------------------------------
# Deterministic parameter / constant construction (host-side numpy glue).
# ---------------------------------------------------------------------------
def build_gg_filter(in_channels, T, fs,
                    f_mean=(23.0, 23.0), bandwidth=(44.0, 44.0),
                    shape=(2.0, 2.0), group_delay=(20.0, 20.0),
                    clamp_f_mean=(1.0, 45.0)):
    """Replicates GeneralizedGaussianFilter.construct_filters() -> (real, imag)."""
    F = T // 2 + 1
    k = np.arange(T // 2, dtype=np.float64)
    n_range = np.concatenate([k * fs / T, [fs / 2.0]]) / (fs / 2.0)          # (F,)

    f_mean_p = np.array(list(f_mean) * in_channels, dtype=np.float64) / (fs / 2.0)
    bw_p = np.array(list(bandwidth) * in_channels, dtype=np.float64) / (fs / 2.0)
    shape_p = np.array(list(shape) * in_channels, dtype=np.float64)
    gd_p = np.array(list(group_delay) * in_channels, dtype=np.float64) / 1000.0

    # clamps applied in construct_filters()
    f_mean_p = np.clip(f_mean_p, clamp_f_mean[0] / (fs / 2.0), clamp_f_mean[1] / (fs / 2.0))
    bw_p = np.clip(bw_p, 1.0 / (fs / 2.0), 1.0)
    shape_p = np.clip(shape_p, 2.0, 3.0)

    pwr = shape_p * 8.0 - 14.0
    scale = bw_p / (2.0 * np.log(2.0) ** (1.0 / pwr))
    mag = np.exp(-(((np.abs(n_range[None, :] - f_mean_p[:, None]) + 1e-8)
                    / scale[:, None]) ** pwr[:, None]))                      # (NF, F)
    mag = mag / mag.max(axis=-1, keepdims=True)

    f = np.linspace(0.0, float(fs), F)
    pha = -gd_p[:, None] * f[None, :] * np.pi
    fr = (mag * np.cos(pha)).astype(np.float32)
    fi = (mag * np.sin(pha)).astype(np.float32)
    return fr, fi


# ---------------------------------------------------------------------------
# Per-device tiling heuristics
# ---------------------------------------------------------------------------
def _tpu_vmem_capacity():
    try:
        return int(pltpu.get_tpu_info().vmem_capacity_bytes)
    except Exception:
        return 64 << 20          # conservative fallback (v7x per-TC VMEM)


def _mxu_row_target():
    # v6e / v7x MXUs are 256x256 -> target M~256; older generations -> 128.
    try:
        kind = jax.devices()[0].device_kind.lower()
    except Exception:
        return 256
    for old in ("v2", "v3", "v4", "v5"):
        if old in kind:
            return 128
    return 256


def choose_b_tile(B, C, row_target):
    """Batch elements per grid step: fill the MXU M dim, keep >=2 grid steps."""
    bt = max(1, min(B, max(1, row_target // C)))
    # >=2 steps along the batch axis when B allows it: enables input
    # pipelining and v7x dual-TensorCore sharding of the "parallel" axis.
    if B >= 2 and bt > -(-B // 2):
        bt = -(-B // 2)
    # 8-sublane alignment of M = bt*C (or a single full-batch tile).
    while (bt * C) % 8 != 0 and bt < B:
        bt += 1
    return bt


# ---------------------------------------------------------------------------
# Model construction: DFT operator + Parseval/filter weights + tiling config
# ---------------------------------------------------------------------------
def build_model(C, T, fs, n_filters, *, batch_hint=8, compute_dtype=jnp.float32,
                force_tile_n=None, **filter_kwargs):
    F = T // 2 + 1
    NF = C * n_filters
    fr, fi = build_gg_filter(C, T, fs, **filter_kwargs)          # (NF, F)

    # Parseval: mean_t(irfft(yre + i*yim, n=T)^2)
    #   = (1/T^2) * sum_k [ wre_k * yre_k^2 + wim_k * yim_k^2 ]
    # wre=[1,2,..,2,(1)], wim=[0,2,..,2,(0)]; DC/Nyquist imag dropped by irfft.
    wre = np.full((F,), 2.0)
    wim = np.full((F,), 2.0)
    wre[0] = 1.0
    wim[0] = 0.0
    if T % 2 == 0:
        wre[-1] = 1.0
        wim[-1] = 0.0
    imag_keep = np.nonzero(wim > 0.0)[0]         # drop zero-weight sin columns
    ncols = F + imag_keep.size                   # live spectral columns

    # --- per-device tiling --------------------------------------------------
    row_target = _mxu_row_target()
    b_tile = choose_b_tile(batch_hint, C, row_target)
    M = b_tile * C
    vmem_cap = _tpu_vmem_capacity()
    budget = int(0.55 * vmem_cap)
    isz_c = jnp.dtype(compute_dtype).itemsize

    def vmem_need(tile_n, nbuf_const):
        return (2 * M * T * isz_c                          # x slab (double buffered)
                + nbuf_const * T * tile_n * isz_c          # DFT operator block(s)
                + nbuf_const * n_filters * M * tile_n * 4  # weight block(s)
                + 2 * M * n_filters * 4                    # output block
                + 2 * M * tile_n * 4)                      # spec/power temporaries

    if force_tile_n is not None:
        tile_n = int(force_tile_n)
    else:
        tile_n = _round_up(ncols, 128)           # single N block if it fits
        if vmem_need(tile_n, 1) > budget:
            while tile_n > 128 and vmem_need(tile_n, 2) > budget:
                tile_n -= 128
    F2 = _round_up(ncols, tile_n)                # pad so tile_n divides exactly
    n_blocks = F2 // tile_n

    # DFT operator as a single matmul: columns [cos(k=0..F-1) | -sin(k kept)],
    # zero-padded to F2 columns (padded columns carry zero Parseval weight).
    n = np.arange(T, dtype=np.float64)[:, None]
    k = np.arange(F, dtype=np.float64)[None, :]
    ang = 2.0 * np.pi * n * k / T
    cri = np.zeros((T, F2), np.float64)
    cri[:, :F] = np.cos(ang)
    cri[:, F:ncols] = -np.sin(ang[:, imag_keep])

    w2 = np.zeros((NF, F2), np.float64)
    w2[:, :F] = wre[None, :] * fr.astype(np.float64) ** 2 / (T * T)
    w2[:, F:ncols] = (wim[imag_keep][None, :]
                      * fi.astype(np.float64)[:, imag_keep] ** 2 / (T * T))

    # Pre-tile per-(channel, filter) weights over the batch sub-axis of a tile
    # so torch.repeat_interleave becomes a free VPU broadcast multiply.
    # TODO(synk): keep weights at (n_filters, C, F2) with an in-kernel sublane
    # broadcast once Mosaic does the (b_tile, C, F2) view relayout-free; until
    # then the tiled copy is single-buffered below, so the cost is bounded.
    wt = w2.reshape(C, n_filters, F2).transpose(1, 0, 2)          # (nf, C, F2)
    wtile = np.tile(wt, (1, b_tile, 1)).astype(np.float32)        # (nf, M, F2)

    return dict(
        C=C, T=T, F2=F2, n_filters=n_filters, NF=NF,
        b_tile=b_tile, M=M, tile_n=tile_n, n_blocks=n_blocks,
        compute_dtype=compute_dtype, vmem_cap=vmem_cap,
        cri=jnp.asarray(cri.astype(np.float32)).astype(compute_dtype),
        wtile=jnp.asarray(wtile),
        fr=jnp.asarray(fr), fi=jnp.asarray(fi),
    )


# ---------------------------------------------------------------------------
# Pallas feature kernel (grid = (batch_tiles, n_blocks); N axis is a reduction)
# ---------------------------------------------------------------------------
def _make_feature_kernel(n_filters):
    def kernel(x_ref, cri_ref, w_ref, out_ref):
        n = pl.program_id(1)

        @pl.when(n == 0)
        def _():
            out_ref[...] = jnp.zeros_like(out_ref)

        # (M, T) @ (T, tile_n): rfft real|imag columns of this N-block (MXU,
        # f32 accumulation even when operands are bf16).
        spec = jnp.dot(x_ref[...], cri_ref[...],
                       preferred_element_type=jnp.float32)
        power = spec * spec                                       # VPU, f32
        cols = [jnp.sum(power * w_ref[f], axis=-1, keepdims=True)
                for f in range(n_filters)]                        # XLU reductions
        out_ref[...] += jnp.concatenate(cols, axis=-1)            # Parseval partials

        @pl.when(n == pl.num_programs(1) - 1)
        def _():
            out_ref[...] = jnp.sqrt(out_ref[...])
        # TODO(synk): lane-dense (n_filters, M) output store is a possible cheap
        # cleanup; the (M, n_filters) block is only M*n_filters*4 B per tile.
    return kernel


# ---------------------------------------------------------------------------
# Forward wrapper
# ---------------------------------------------------------------------------
def mag_eegminer_forward(x, model):
    B, C, T = x.shape
    assert C == model["C"] and T == model["T"]
    cri, wtile = model["cri"], model["wtile"]
    w, bias = model["w"], model["b"]
    n_filters, M, F2 = wtile.shape
    b_tile = model["b_tile"]
    tile_n = model["tile_n"]
    n_blocks = model["n_blocks"]
    NF = model["NF"]
    cdt = model["compute_dtype"]
    isz = jnp.dtype(cdt).itemsize

    # Pad batch to a multiple of the tile (padded rows are zeros -> feature 0,
    # sliced off before the head, so batch statistics are unaffected).
    Bp = _round_up(B, b_tile)
    if Bp != B:
        x = jnp.concatenate([x, jnp.zeros((Bp - B, C, T), x.dtype)], axis=0)
    xf = x.reshape(Bp * C, T).astype(cdt)        # (b, c)-major rows, compute dtype

    grid = (Bp // b_tile, n_blocks)

    # Constants are single-buffered when grid-constant (n_blocks == 1),
    # double-buffered when N-blocked.
    nbuf_const = 1 if n_blocks == 1 else 2
    vmem_need = (2 * M * T * isz
                 + nbuf_const * T * tile_n * isz
                 + nbuf_const * n_filters * M * tile_n * 4
                 + 2 * M * n_filters * 4
                 + 2 * M * tile_n * 4)           # spec/power temporaries
    vmem_limit = int(min(max(int(1.5 * vmem_need) + (2 << 20), 32 << 20),
                         int(0.8 * model["vmem_cap"])))

    const_mode = pl.Buffered(1) if n_blocks == 1 else None

    def _const_spec(shape, index_map):
        if const_mode is None:
            return pl.BlockSpec(shape, index_map)
        return pl.BlockSpec(shape, index_map, pipeline_mode=const_mode)

    cost = pl.CostEstimate(
        flops=2 * (Bp * C) * T * F2 + 3 * (Bp * C) * F2 * n_filters,
        transcendentals=Bp * C * n_filters,
        bytes_accessed=(xf.size * isz + cri.size * isz
                        + wtile.size * 4 + Bp * C * n_filters * 4),
    )

    feats = pl.pallas_call(
        _make_feature_kernel(n_filters),
        out_shape=jax.ShapeDtypeStruct((Bp * C, n_filters), jnp.float32),
        grid_spec=pltpu.PrefetchScalarGridSpec(
            num_scalar_prefetch=0,
            grid=grid,
            in_specs=[
                pl.BlockSpec((M, T), lambda i, n: (i, 0)),               # x slab
                _const_spec((T, tile_n), lambda i, n: (0, n)),           # [cos|-sin]
                _const_spec((n_filters, M, tile_n),
                            lambda i, n: (0, 0, n)),                     # weights
            ],
            out_specs=pl.BlockSpec((M, n_filters), lambda i, n: (i, 0)),
        ),
        compiler_params=pltpu.CompilerParams(
            dimension_semantics=("parallel", "arbitrary"),
            vmem_limit_bytes=vmem_limit,
        ),
        cost_estimate=cost,
    )(xf, cri, wtile)

    # rows are (b, c)-major, columns are filter index -> (B, C*n_filters)
    feat = feats.reshape(Bp, NF)[:B]

    # Head in plain JAX (a few KB of work, XLA fuses it):
    # BatchNorm1d(affine=False) in training mode (batch statistics, eps=1e-5),
    # then Linear + sigmoid.
    # TODO(synk): for eval-mode parity with PyTorch, use running_mean/var here.
    mu = jnp.mean(feat, axis=0, keepdims=True)
    var = jnp.mean((feat - mu) ** 2, axis=0, keepdims=True)
    fn = (feat - mu) * jax.lax.rsqrt(var + 1e-5)
    return jax.nn.sigmoid(fn @ w + bias)


# ---------------------------------------------------------------------------
# Pure-JAX reference (full rfft -> filter -> irfft -> mean path)
# ---------------------------------------------------------------------------
def reference_forward(x, fr, fi, w, b):
    B, C, T = x.shape
    X = jnp.fft.rfft(x, axis=-1)
    nf = fr.shape[0] // C
    xr = jnp.repeat(jnp.real(X), nf, axis=1)
    xi = jnp.repeat(jnp.imag(X), nf, axis=1)
    y = jnp.fft.irfft(xr * fr[None] + 1j * (xi * fi[None]), n=T, axis=-1)
    feat = jnp.sqrt(jnp.mean(y * y, axis=-1))
    mu = feat.mean(axis=0, keepdims=True)
    var = ((feat - mu) ** 2).mean(axis=0, keepdims=True)
    fn = (feat - mu) / jnp.sqrt(var + 1e-5)
    return jax.nn.sigmoid(fn @ w + b)


if __name__ == "__main__":
    # Small shapes consistent with the module: in_shape = (electrodes, time)
    fs = 128
    n_filters = 2
    B, C, n_out = 8, 4, 3

    key = jax.random.PRNGKey(0)
    kx, kw = jax.random.split(key)

    def run_case(T, compute_dtype, force_tile_n, tol):
        x = jax.random.normal(kx, (B, C, T), dtype=jnp.float32)
        model = build_model(C, T, fs, n_filters, batch_hint=B,
                            compute_dtype=compute_dtype,
                            force_tile_n=force_tile_n)
        NF = model["NF"]
        # fc_out: deterministic uniform init (nn.Linear-style bound), zero bias
        bound = 1.0 / np.sqrt(NF)
        model["w"] = jax.random.uniform(kw, (NF, n_out), jnp.float32, -bound, bound)
        model["b"] = jnp.zeros((1, n_out), jnp.float32)

        fwd = jax.jit(lambda xx: mag_eegminer_forward(xx, model))
        out = jax.block_until_ready(fwd(x))
        ref = jax.block_until_ready(
            reference_forward(x, model["fr"], model["fi"], model["w"], model["b"]))
        np.testing.assert_allclose(np.asarray(out), np.asarray(ref),
                                   atol=tol, rtol=tol)

    # 1) f32, single spectral block, single-buffered constants (Buffered(1)).
    run_case(T=128, compute_dtype=jnp.float32, force_tile_n=None, tol=2e-3)
    # 2) f32, N-blocked accumulation path (3 blocks of 128 spectral lanes).
    run_case(T=384, compute_dtype=jnp.float32, force_tile_n=128, tol=2e-3)
    # 3) bf16 MXU operands (f32 accumulation) -- looser tolerance.
    run_case(T=128, compute_dtype=jnp.bfloat16, force_tile_n=None, tol=3e-2)

    print("KERNEL_OK")
</pallas_src>

<mosaic_0001>
module attributes {stable_mosaic.version = 11 : i64} {
  func.func @kernel(%arg0: i32, %arg1: i32, %arg2: memref<16x128xf32, #tpu.memory_space<vmem>>, %arg3: memref<128x128xf32, #tpu.memory_space<vmem>>, %arg4: memref<2x16x128xf32, #tpu.memory_space<vmem>>, %arg5: memref<16x2xf32, #tpu.memory_space<vmem>>) attributes {dimension_semantics = [#tpu.dimension_semantics<parallel>, #tpu.dimension_semantics<arbitrary>], iteration_bounds = array<i64: 2, 1>, scalar_prefetch = 0 : i64, scratch_operands = 0 : i64, tpu.core_type = #tpu.core_type<tc>, window_params = [{transform_indices = @transform_0, window_bounds = array<i64: 16, 128>}, {pipeline_mode = #tpu.pipeline_mode<synchronous>, transform_indices = @transform_1, window_bounds = array<i64: 128, 128>}, {pipeline_mode = #tpu.pipeline_mode<synchronous>, transform_indices = @transform_2, window_bounds = array<i64: 2, 16, 128>}, {transform_indices = @transform_3, window_bounds = array<i64: 16, 2>}]} {
    %c0_i32 = arith.constant 0 : i32
    %0 = arith.cmpi eq, %arg1, %c0_i32 : i32
    %1 = arith.extui %0 : i1 to i32
    %c0_i32_0 = arith.constant 0 : i32
    %2 = arith.cmpi ne, %1, %c0_i32_0 : i32
    scf.if %2 {
      %cst_17 = arith.constant 0.000000e+00 : f32
      %24 = vector.broadcast %cst_17 : f32 to vector<16x2xf32>
      %c0_18 = arith.constant 0 : index
      %c0_19 = arith.constant 0 : index
      %25 = vector.load %arg5[%c0_18, %c0_19] : memref<16x2xf32, #tpu.memory_space<vmem>>, vector<16x2xf32>
      tpu.vector_store %arg5[%c0_18, %c0_19], %24 {strides = array<i32>} : memref<16x2xf32, #tpu.memory_space<vmem>>, vector<16x2xf32>,
    } else {
    }
    %c0 = arith.constant 0 : index
    %c0_1 = arith.constant 0 : index
    %3 = vector.load %arg2[%c0, %c0_1] : memref<16x128xf32, #tpu.memory_space<vmem>>, vector<16x128xf32>
    %c0_2 = arith.constant 0 : index
    %c0_3 = arith.constant 0 : index
    %4 = vector.load %arg3[%c0_2, %c0_3] : memref<128x128xf32, #tpu.memory_space<vmem>>, vector<128x128xf32>
    %cst = arith.constant dense<0.000000e+00> : vector<16x128xf32>
    %5 = tpu.matmul %3, %4, %cst {dimension_numbers = #tpu.dot_dimension_numbers<[1], [0], [0], [1], [0, 0, 1, 1], [], []>} : vector<16x128xf32>, vector<128x128xf32>, vector<16x128xf32> -> vector<16x128xf32>
    %6 = arith.mulf %5, %5 : vector<16x128xf32>
    %c0_4 = arith.constant 0 : index
    %c0_5 = arith.constant 0 : index
    %c0_6 = arith.constant 0 : index
    %7 = vector.load %arg4[%c0_4, %c0_5, %c0_6] : memref<2x16x128xf32, #tpu.memory_space<vmem>>, vector<1x16x128xf32>
    %8 = vector.shape_cast %7 : vector<1x16x128xf32> to vector<16x128xf32>
    %9 = arith.mulf %6, %8 : vector<16x128xf32>
    %cst_7 = arith.constant dense<0.000000e+00> : vector<16xf32>
    %10 = vector.multi_reduction <add>, %9, %cst_7 [1] : vector<16x128xf32> to vector<16xf32>
    %11 = vector.shape_cast %10 : vector<16xf32> to vector<16x1xf32>
    %c1 = arith.constant 1 : index
    %c0_8 = arith.constant 0 : index
    %c0_9 = arith.constant 0 : index
    %12 = vector.load %arg4[%c1, %c0_8, %c0_9] : memref<2x16x128xf32, #tpu.memory_space<vmem>>, vector<1x16x128xf32>
    %13 = vector.shape_cast %12 : vector<1x16x128xf32> to vector<16x128xf32>
    %14 = arith.mulf %6, %13 : vector<16x128xf32>
    %cst_10 = arith.constant dense<0.000000e+00> : vector<16xf32>
    %15 = vector.multi_reduction <add>, %14, %cst_10 [1] : vector<16x128xf32> to vector<16xf32>
    %16 = vector.shape_cast %15 : vector<16xf32> to vector<16x1xf32>
    %c0_11 = arith.constant 0 : index
    %c0_12 = arith.constant 0 : index
    %17 = vector.load %arg5[%c0_11, %c0_12] : memref<16x2xf32, #tpu.memory_space<vmem>>, vector<16x2xf32>
    %18 = tpu.concatenate %11, %16 in 1 : vector<16x1xf32>, vector<16x1xf32> -> vector<16x2xf32>
    %19 = arith.addf %17, %18 : vector<16x2xf32>
    %c0_13 = arith.constant 0 : index
    %c0_14 = arith.constant 0 : index
    %20 = vector.load %arg5[%c0_13, %c0_14] : memref<16x2xf32, #tpu.memory_space<vmem>>, vector<16x2xf32>
    tpu.vector_store %arg5[%c0_13, %c0_14], %19 {strides = array<i32>} : memref<16x2xf32, #tpu.memory_space<vmem>>, vector<16x2xf32>,
    %c0_i32_15 = arith.constant 0 : i32
    %21 = arith.cmpi eq, %arg1, %c0_i32_15 : i32
    %22 = arith.extui %21 : i1 to i32
    %c0_i32_16 = arith.constant 0 : i32
    %23 = arith.cmpi ne, %22, %c0_i32_16 : i32
    scf.if %23 {
      %c0_17 = arith.constant 0 : index
      %c0_18 = arith.constant 0 : index
      %24 = vector.load %arg5[%c0_17, %c0_18] : memref<16x2xf32, #tpu.memory_space<vmem>>, vector<16x2xf32>
      %25 = math.sqrt %24 : vector<16x2xf32>
      %c0_19 = arith.constant 0 : index
      %c0_20 = arith.constant 0 : index
      %26 = vector.load %arg5[%c0_19, %c0_20] : memref<16x2xf32, #tpu.memory_space<vmem>>, vector<16x2xf32>
      tpu.vector_store %arg5[%c0_19, %c0_20], %25 {strides = array<i32>} : memref<16x2xf32, #tpu.memory_space<vmem>>, vector<16x2xf32>,
    } else {
    }
    return
  }
  func.func @transform_0(%arg0: i32, %arg1: i32) -> (i32, i32) {
    %c0_i32 = arith.constant 0 : i32
    %c0_i32_0 = arith.constant 0 : i32
    return %arg0, %c0_i32 : i32, i32
  }
  func.func @transform_1(%arg0: i32, %arg1: i32) -> (i32, i32) {
    %c0_i32 = arith.constant 0 : i32
    %c0_i32_0 = arith.constant 0 : i32
    return %c0_i32, %arg1 : i32, i32
  }
  func.func @transform_2(%arg0: i32, %arg1: i32) -> (i32, i32, i32) {
    %c0_i32 = arith.constant 0 : i32
    %c0_i32_0 = arith.constant 0 : i32
    %c0_i32_1 = arith.constant 0 : i32
    return %c0_i32, %c0_i32_0, %arg1 : i32, i32, i32
  }
  func.func @transform_3(%arg0: i32, %arg1: i32) -> (i32, i32) {
    %c0_i32 = arith.constant 0 : i32
    %c0_i32_0 = arith.constant 0 : i32
    return %arg0, %c0_i32 : i32, i32
  }
}

</mosaic_0001>

<llo_original>
// kernel: _lambda_.1
$region0: #{_lambda_.1}
  #allocation0 [shape = 'u32[]', space=smem, size = 0x4, offset = 0x4, fixed_abs, tag = 'smem constant byte address 0x4 - core index']
  #allocation1 [shape = 'u32[144,128]{1,0:T(1,128)}', space=vmem, size = 0x12000, scoped, tag = 'internal scratch']
  %s0 = inlined_call_operand.hbm [shape: f32[32,128], index: 0, kind: input, shape index: {}]
  %s1 = inlined_call_operand.hbm [shape: f32[128,128], index: 1, kind: input, shape index: {}]
  %s2 = inlined_call_operand.hbm [shape: f32[2,16,128], index: 2, kind: input, shape index: {}]
  %s3 = inlined_call_operand.vmem [shape: f32[32,2], index: 3, kind: output, shape index: {}]
  %s4 = sld [smem:[#allocation0]]
  $region65: #{_lambda_.1} parent=0
    _
  %s6 = ssub.s32 1, %s4
  %s7 = scalar_select 0, %s6, %s4
  $region1: #{_lambda_.1} parent=0
    #allocation2 [shape = 'u8[16384]{0}', space=vmem, size = 0x4000, scoped, tag = 'input window, operand 0']
    #allocation3 [shape = 's32[2]{0}', space=sflag, size = 0x8, scoped, tag = 'scoped memory for _lambda_.1']
    #allocation4 [shape = 'u8[65536]{0}', space=vmem, size = 0x10000, scoped, tag = 'input window, operand 1, single buffered']
    #allocation5 [shape = 's32[1]{0}', space=sflag, size = 0x4, scoped, tag = 'scoped memory for _lambda_.1']
    #allocation6 [shape = 'u8[16384]{0}', space=vmem, size = 0x4000, scoped, tag = 'input window, operand 2, single buffered']
    %8 = vsyncpa [#allocation3], 0
    %s9 = scalar_lea.sflag [#allocation3], 1
    %10 = vsyncpa %s9, 0
    %11 = vsyncpa [#allocation5], 0
    loop: start=0, step=1, limit=4
    $region2: #{_lambda_.1} parent=1 // loop_pre_header
      _
    $region3: #{_lambda_.1} parent=1 // loop_header
      %s13 = sphi 0, %s17
      %p14 = scmp.ge.s32.totalorder %s13, 4
      %s20 = sphi 0, %s32
      %s21 = sphi 0, %s28
      %s22 = sphi 0, %s20
      %s23 = sphi 0, %s21
      %s24 = sphi 0, %s22
      %s25 = sphi 0, %s23
      %s35 = sphi 0, %s37
      %s38 = sphi 0, %s35
      %s39 = sphi 0, %s38
      %s55 = sphi 0, %s39
      %s61 = sphi 0, %s63
      %s64 = sphi 0, %s61
      %s65 = sphi 0, %s64
      %s81 = sphi 0, %s65
      %s87 = sphi 0, %s89
      %s90 = sphi 0, %s87
      %s91 = sphi 0, %s90
      %s107 = sphi 0, %s91
      %s113 = sphi 0, %s115
      %s116 = sphi 0, %s113
      %s117 = sphi 0, %s116
      %s133 = sphi 0, %s117
    $region4: #{_lambda_.1} parent=1 // loop_header_branch
      %16 = sbr.rel (%p14) target = $region8
    $region5: #{_lambda_.1} parent=1 // loop_body
      %s18 = ssub.s32 %s13, 1
      %s19 = ssub.s32 %s13, 2
      %s26 = sadd.s32 1, %s21
      %p27 = scmp.ge.s32.totalorder %s26, 1
      %s28 = scalar_select %p27, 0, %s26
      %s29 = sadd.s32 1, %s20
      %s30 = scalar_select %p27, %s29, %s20
      %p31 = scmp.ge.s32.totalorder %s30, 2
      %s32 = scalar_select %p31, 0, %s30
      %s33 = ssub.s32 %s20, %s32
      %p34 = scmp.eq.s32.totalorder %s33, 0
      %s36 = sadd.s32 %s35, 1
      %s37 = scalar_select %p34, %s35, %s36
      %p40 = pneg %p34
      %p41 = scmp.eq.s32.totalorder %s13, 1
      %p42 = por %p40, %p41
      %p43 = scmp.ne.s32.totalorder %s35, %s38
      %p44 = scmp.eq.s32.totalorder %s13, 0
      %p45 = por %p43, %p44
      %p46 = scmp.ne.s32.totalorder %s35, %s38
      %p47 = scmp.eq.s32.totalorder %s18, 1
      %p48 = por %p46, %p47
      %p49 = scmp.ne.s32.totalorder %s38, %s39
      %p50 = scmp.eq.s32.totalorder %s18, 0
      %p51 = por %p49, %p50
      %p52 = scmp.ne.s32.totalorder %s38, %s39
      %p53 = scmp.eq.s32.totalorder %s19, 1
      %p54 = por %p52, %p53
      %p56 = scmp.ne.s32.totalorder %s39, %s55
      %p57 = scmp.eq.s32.totalorder %s19, 0
      %p58 = por %p56, %p57
      %s59 = ssub.s32 %s21, %s28
      %p60 = scmp.eq.s32.totalorder %s59, 0
      %s62 = sadd.s32 %s61, 1
      %s63 = scalar_select %p60, %s61, %s62
      %p66 = pneg %p60
      %p67 = scmp.eq.s32.totalorder %s13, 1
      %p68 = por %p66, %p67
      %p69 = scmp.ne.s32.totalorder %s61, %s64
      %p70 = scmp.eq.s32.totalorder %s13, 0
      %p71 = por %p69, %p70
      %p72 = scmp.ne.s32.totalorder %s61, %s64
      %p73 = scmp.eq.s32.totalorder %s18, 1
      %p74 = por %p72, %p73
      %p75 = scmp.ne.s32.totalorder %s64, %s65
      %p76 = scmp.eq.s32.totalorder %s18, 0
      %p77 = por %p75, %p76
      %p78 = scmp.ne.s32.totalorder %s64, %s65
      %p79 = scmp.eq.s32.totalorder %s19, 1
      %p80 = por %p78, %p79
      %p82 = scmp.ne.s32.totalorder %s65, %s81
      %p83 = scmp.eq.s32.totalorder %s19, 0
      %p84 = por %p82, %p83
      %s85 = ssub.s32 %s21, %s28
      %p86 = scmp.eq.s32.totalorder %s85, 0
      %s88 = sadd.s32 %s87, 1
      %s89 = scalar_select %p86, %s87, %s88
      %p92 = pneg %p86
      %p93 = scmp.eq.s32.totalorder %s13, 1
      %p94 = por %p92, %p93
      %p95 = scmp.ne.s32.totalorder %s87, %s90
      %p96 = scmp.eq.s32.totalorder %s13, 0
      %p97 = por %p95, %p96
      %p98 = scmp.ne.s32.totalorder %s87, %s90
      %p99 = scmp.eq.s32.totalorder %s18, 1
      %p100 = por %p98, %p99
      %p101 = scmp.ne.s32.totalorder %s90, %s91
      %p102 = scmp.eq.s32.totalorder %s18, 0
      %p103 = por %p101, %p102
      %p104 = scmp.ne.s32.totalorder %s90, %s91
      %p105 = scmp.eq.s32.totalorder %s19, 1
      %p106 = por %p104, %p105
      %p108 = scmp.ne.s32.totalorder %s91, %s107
      %p109 = scmp.eq.s32.totalorder %s19, 0
      %p110 = por %p108, %p109
      %s111 = ssub.s32 %s20, %s32
      %p112 = scmp.eq.s32.totalorder %s111, 0
      %s114 = sadd.s32 %s113, 1
      %s115 = scalar_select %p112, %s113, %s114
      %p118 = pneg %p112
      %p119 = scmp.eq.s32.totalorder %s13, 1
      %p120 = por %p118, %p119
      %p121 = scmp.ne.s32.totalorder %s113, %s116
      %p122 = scmp.eq.s32.totalorder %s13, 0
      %p123 = por %p121, %p122
      %p124 = scmp.ne.s32.totalorder %s113, %s116
      %p125 = scmp.eq.s32.totalorder %s18, 1
      %p126 = por %p124, %p125
      %p127 = scmp.ne.s32.totalorder %s116, %s117
      %p128 = scmp.eq.s32.totalorder %s18, 0
      %p129 = por %p127, %p128
      %p130 = scmp.ne.s32.totalorder %s116, %s117
      %p131 = scmp.eq.s32.totalorder %s19, 1
      %p132 = por %p130, %p131
      %p134 = scmp.ne.s32.totalorder %s117, %s133
      %p135 = scmp.eq.s32.totalorder %s19, 0
      %p136 = por %p134, %p135
      %p137 = scmp.le.s32.totalorder 1, %s13
      %p138 = scmp.lt.s32.totalorder %s13, 3
      %p139 = pnand %p137, %p138
      %p140 = pneg %p139
      // Predicated region
      $region9: #{_lambda_.1} parent=5 // pred_check
        _
      $region10: #{_lambda_.1} parent=5 // pred_check_branch
        %142 = sbr.rel (%p139) target = $region12
      $region11: #{_lambda_.1} parent=5 // pred_region
        %s143 = ssub.s32 %s13, 1
        // Predicated region
        $region13: #{_lambda_.1} parent=11 // pred_check
          %p144 = pneg %p77
        $region14: #{_lambda_.1} parent=11 // pred_check_branch
          %146 = sbr.rel (%p144) target = $region16
        $region15: #{_lambda_.1} parent=11 // pred_region
          %s148 = ssub.s32 2048, 2048
          %149 = vsyncadd [#allocation5], %s148
          %s150 = smul.addr %s23, 128
          %s151 = scalar_lea.hbm %s1, %s150
          %s152 = sshll.u32 [#allocation4], 4
          %s153 = int_to_ptr.vmem [resolvable:$true] %s152
          %158 = dma.hbm_to_vmem [thread:$0]  %s151, 2048, %s153, [#allocation5], 128, 128, 8
        $region16: #{_lambda_.1} parent=11 // pred_fallthru
          _
        // Predicated region
        $region17: #{_lambda_.1} parent=11 // pred_check
          %p159 = pneg %p103
        $region18: #{_lambda_.1} parent=11 // pred_check_branch
          %161 = sbr.rel (%p159) target = $region20
        $region19: #{_lambda_.1} parent=11 // pred_region
          %s163 = ssub.s32 512, 512
          %164 = vsyncadd [#allocation5], %s163
          %s165 = smul.addr %s23, 128
          %s166 = scalar_lea.hbm %s2, %s165
          %s167 = sshll.u32 [#allocation6], 4
          %s168 = int_to_ptr.vmem [resolvable:$true] %s167
          %173 = dma.hbm_to_vmem [thread:$0]  %s166, 512, %s168, [#allocation5], 128, 128, 8
        $region20: #{_lambda_.1} parent=11 // pred_fallthru
          _
      $region12: #{_lambda_.1} parent=5 // pred_fallthru
        _
      %p174 = scmp.lt.s32.totalorder %s13, 2
      // Predicated region
      $region21: #{_lambda_.1} parent=5 // pred_check
        %p175 = pneg %p174
      $region22: #{_lambda_.1} parent=5 // pred_check_branch
        %177 = sbr.rel (%p175) target = $region24
      $region23: #{_lambda_.1} parent=5 // pred_region
        // Predicated region
        $region25: #{_lambda_.1} parent=23 // pred_check
          %p178 = pneg %p45
        $region26: #{_lambda_.1} parent=23 // pred_check_branch
          %180 = sbr.rel (%p178) target = $region28
        $region27: #{_lambda_.1} parent=23 // pred_region
          %s181 = sand.u32 %s35, 1
          %s182 = scalar_lea.sflag [#allocation3], %s181
          %s183 = sand.u32 %s35, 1
          %s184 = smul.addr %s183, 16
          %s185 = scalar_lea.vmem [#allocation2], %s184
          %s186 = smul.u32 2, %s20
          %s188 = ssub.s32 256, 256
          %189 = vsyncadd %s182, %s188
          %s190 = smul.addr %s186, 128
          %s191 = scalar_lea.hbm %s0, %s190
          %s192 = sshll.u32 %s185, 4
          %s193 = int_to_ptr.vmem [resolvable:$true] %s192
          %198 = dma.hbm_to_vmem [thread:$0]  %s191, 256, %s193, %s182, 128, 128, 8
        $region28: #{_lambda_.1} parent=23 // pred_fallthru
          _
      $region24: #{_lambda_.1} parent=5 // pred_fallthru
        _
      %p199 = scmp.le.s32.totalorder 1, %s13
      %p200 = scmp.lt.s32.totalorder %s13, 3
      %p201 = pnand %p199, %p200
      %p202 = pneg %p201
      // Predicated region
      $region29: #{_lambda_.1} parent=5 // pred_check
        _
      $region30: #{_lambda_.1} parent=5 // pred_check_branch
        %204 = sbr.rel (%p201) target = $region32
      $region31: #{_lambda_.1} parent=5 // pred_region
        %s205 = ssub.s32 %s13, 1
        %s206 = sand.u32 %s38, 1
        %s207 = scalar_lea.sflag [#allocation3], %s206
        %s208 = sand.u32 %s38, 1
        %s209 = smul.addr %s208, 16
        %s210 = scalar_lea.vmem [#allocation2], %s209
        // Predicated region
        $region33: #{_lambda_.1} parent=31 // pred_check
          %p211 = pneg %p51
        $region34: #{_lambda_.1} parent=31 // pred_check_branch
          %213 = sbr.rel (%p211) target = $region36
        $region35: #{_lambda_.1} parent=31 // pred_region
          %214 = dma.done %s207, 256
        $region36: #{_lambda_.1} parent=31 // pred_fallthru
          _
        // Predicated region
        $region37: #{_lambda_.1} parent=31 // pred_check
          %p215 = pneg %p77
        $region38: #{_lambda_.1} parent=31 // pred_check_branch
          %217 = sbr.rel (%p215) target = $region40
        $region39: #{_lambda_.1} parent=31 // pred_region
          %218 = dma.done [#allocation5], 2048
        $region40: #{_lambda_.1} parent=31 // pred_fallthru
          _
        // Predicated region
        $region41: #{_lambda_.1} parent=31 // pred_check
          %p219 = pneg %p103
        $region42: #{_lambda_.1} parent=31 // pred_check_branch
          %221 = sbr.rel (%p219) target = $region44
        $region43: #{_lambda_.1} parent=31 // pred_region
          %222 = dma.done [#allocation5], 512
        $region44: #{_lambda_.1} parent=31 // pred_fallthru
          _
        %s223 = sand.u32 %s38, 1
        %s224 = scalar_lea.sflag [#allocation3], %s223
        %s225 = sand.u32 %s38, 1
        %s226 = smul.addr %s225, 16
        %s227 = scalar_lea.vmem [#allocation2], %s226
        %p228 = pneg %p51
        %p229 = pneg %p48
        %p230 = pneg %p77
        %p231 = pneg %p74
        %p232 = pneg %p103
        %p233 = pneg %p100
        %p234 = pneg %p129
        %p235 = pneg %p126
        %s236 = smul.u32 2, %s22
        %p237 = scmp.lt.s32.totalorder %s236, 3
        %s238 = scalar_select %p237, %s236, 3
        %s239 = smul.addr %s238, 8
        %s240 = scalar_lea.vmem %s3, %s239
        %s241 = smul.u32 2, %s22
        %s242 = smul.u32 2, %s22
        %p243 = scmp.lt.s32.totalorder %s242, 3
        %s244 = scalar_select %p243, %s242, 3
        %s245 = smul.addr %s244, 8
        %s246 = scalar_lea.vmem %s3, %s245
        %s247 = smul.u32 2, %s22
        %p248 = scmp.eq.s32.totalorder %s23, 0
        // Predicated region
        $region45: #{_lambda_.1} parent=31 // pred_check
          %p249 = pneg %p248
        $region46: #{_lambda_.1} parent=31 // pred_check_branch
          %251 = sbr.rel (%p249) target = $region48
        $region47: #{_lambda_.1} parent=31 // pred_region
          %vm252 = vcmask 15360
          %253 = vst.msk [vmem:[%s246] sm:$0xff] %vm252, 0.0
          %254 = vst.msk [vmem:[%s246 + $0x8] sm:$0xff] %vm252, 0.0
        $region48: #{_lambda_.1} parent=31 // pred_fallthru
          _
        %v255 = vld [vmem:[%s210] sm:$0xff]
        %v256 = vld [vmem:[%s210 + $0x8] sm:$0xff]
        %v257 = vld [vmem:[#allocation4] sm:$0xff]
        %v258 = vld [vmem:[#allocation4 + $0x8] sm:$0xff]
        %v259 = vld [vmem:[#allocation4 + $0x10] sm:$0xff]
        %v260 = vld [vmem:[#allocation4 + $0x18] sm:$0xff]
        %v261 = vld [vmem:[#allocation4 + $0x20] sm:$0xff]
        %v262 = vld [vmem:[#allocation4 + $0x28] sm:$0xff]
        %v263 = vld [vmem:[#allocation4 + $0x30] sm:$0xff]
        %v264 = vld [vmem:[#allocation4 + $0x38] sm:$0xff]
        %v265 = vld [vmem:[#allocation4 + $0x40] sm:$0xff]
        %v266 = vld [vmem:[#allocation4 + $0x48] sm:$0xff]
        %v267 = vld [vmem:[#allocation4 + $0x50] sm:$0xff]
        %v268 = vld [vmem:[#allocation4 + $0x58] sm:$0xff]
        %v269 = vld [vmem:[#allocation4 + $0x60] sm:$0xff]
        %v270 = vld [vmem:[#allocation4 + $0x68] sm:$0xff]
        %v271 = vld [vmem:[#allocation4 + $0x70] sm:$0xff]
        %v272 = vld [vmem:[#allocation4 + $0x78] sm:$0xff]
        %273 = vmatprep.subr.mxu0 0.0
        %274 = vmatpush1.msra.mxu0 %v272
        %275 = vmatprep.subr.mxu0 0.0
        %276 = vmatpush1.msra.mxu0 %v271
        %277 = vmatprep.subr.mxu0 0.0
        %278 = vmatpush1.msra.mxu0 %v270
        %279 = vmatprep.subr.mxu0 0.0
        %280 = vmatpush1.msra.mxu0 %v269
        %281 = vmatprep.subr.mxu0 0.0
        %282 = vmatpush1.msra.mxu0 %v268
        %283 = vmatprep.subr.mxu0 0.0
        %284 = vmatpush1.msra.mxu0 %v267
        %285 = vmatprep.subr.mxu0 0.0
        %286 = vmatpush1.msra.mxu0 %v266
        %287 = vmatprep.subr.mxu0 0.0
        %288 = vmatpush1.msra.mxu0 %v265
        %289 = vmatprep.subr.mxu0 0.0
        %290 = vmatpush1.msra.mxu0 %v264
        %291 = vmatprep.subr.mxu0 0.0
        %292 = vmatpush1.msra.mxu0 %v263
        %293 = vmatprep.subr.mxu0 0.0
        %294 = vmatpush1.msra.mxu0 %v262
        %295 = vmatprep.subr.mxu0 0.0
        %296 = vmatpush1.msra.mxu0 %v261
        %297 = vmatprep.subr.mxu0 0.0
        %298 = vmatpush1.msra.mxu0 %v260
        %299 = vmatprep.subr.mxu0 0.0
        %300 = vmatpush1.msra.mxu0 %v259
        %301 = vmatprep.subr.mxu0 0.0
        %302 = vmatpush1.msra.mxu0 %v258
        %303 = vmatprep.subr.mxu0 0.0
        %304 = vmatpush1.msra.mxu0 %v257
        %305 = vmatprep.subr.mxu0 0.0
        %306 = vmatpush2.msra.mxu0 0.0
        %307 = vmatprep.subr.mxu0 0.0
        %308 = vmatpush2.msra.mxu0 0.0
        %309 = vmatprep.subr.mxu0 0.0
        %310 = vmatpush2.msra.mxu0 0.0
        %311 = vmatprep.subr.mxu0 0.0
        %312 = vmatpush2.msra.mxu0 0.0
        %313 = vmatprep.subr.mxu0 0.0
        %314 = vmatpush2.msra.mxu0 0.0
        %315 = vmatprep.subr.mxu0 0.0
        %316 = vmatpush2.msra.mxu0 0.0
        %317 = vmatprep.subr.mxu0 0.0
        %318 = vmatpush2.msra.mxu0 0.0
        %319 = vmatprep.subr.mxu0 0.0
        %320 = vmatpush2.msra.mxu0 0.0
        %321 = vmatprep.subr.mxu0 0.0
        %322 = vmatpush2.msra.mxu0 0.0
        %323 = vmatprep.subr.mxu0 0.0
        %324 = vmatpush2.msra.mxu0 0.0
        %325 = vmatprep.subr.mxu0 0.0
        %326 = vmatpush2.msra.mxu0 0.0
        %327 = vmatprep.subr.mxu0 0.0
        %328 = vmatpush2.msra.mxu0 0.0
        %329 = vmatprep.subr.mxu0 0.0
        %330 = vmatpush2.msra.mxu0 0.0
        %331 = vmatprep.subr.mxu0 0.0
        %332 = vmatpush2.msra.mxu0 0.0
        %333 = vmatprep.subr.mxu0 0.0
        %334 = vmatpush2.msra.mxu0 0.0
        %335 = vmatprep.subr.mxu0 0.0
        %336 = vmatpush2.msra.mxu0 0.0
        %337 = vmatprep.mubr.f32.mxu0 0.0
        %338 = vmatmul.mubr.f32.gmra.mxu0 %v255
        %v339 = vpop.f32.mrf.mxu0
        %v340 = vadd.f32 0.0, %v339
        %v341 = vpop.f32.mrf.mxu0
        %342 = vmatprep.mubr.f32.mxu0 0.0
        %343 = vmatmul.mubr.f32.gmra.mxu0 %v256
        %v344 = vpop.f32.mrf.mxu0
        %v345 = vadd.f32 0.0, %v344
        %v346 = vpop.f32.mrf.mxu0
        %347 = vdwg.mxu0
        %v348 = vmul.f32 %v340, %v340
        %v349 = vmul.f32 %v345, %v345
        %v350 = vld [vmem:[#allocation6] sm:$0xff]
        %v351 = vld [vmem:[#allocation6 + $0x8] sm:$0xff]
        %v352 = vmul.f32 %v348, %v350
        %v353 = vmul.f32 %v349, %v351
        %354 = vadd.xlane.f32.xlu0 %v352
        %v355 = vpop.xlane.xlu0 %354
        %356 = vadd.xlane.f32.xlu0 %v353
        %v357 = vpop.xlane.xlu0 %356
        %s358 = scalar_lea.vmem [#allocation6], 16
        %v359 = vld [vmem:[%s358] sm:$0xff]
        %v360 = vld [vmem:[%s358 + $0x8] sm:$0xff]
        %v361 = vmul.f32 %v348, %v359
        %v362 = vmul.f32 %v349, %v360
        %363 = vadd.xlane.f32.xlu0 %v361
        %v364 = vpop.xlane.xlu0 %363
        %365 = vadd.xlane.f32.xlu0 %v362
        %v366 = vpop.xlane.xlu0 %365
        %v367 = vld [vmem:[%s246] sm:$0xff]
        %v368 = vld [vmem:[%s246 + $0x8] sm:$0xff]
        %vm369 = vcmask 7168
        %v370 = vsel %vm369, %v355, %v364
        %v371 = vsel %vm369, %v357, %v366
        %v372 = vadd.f32 %v367, %v370
        %v373 = vadd.f32 %v368, %v371
        %vm374 = vcmask 15360
        %375 = vst.msk [vmem:[%s246] sm:$0xff] %vm374, %v372
        %376 = vst.msk [vmem:[%s246 + $0x8] sm:$0xff] %vm374, %v373
        // Predicated region
        $region49: #{_lambda_.1} parent=31 // pred_check
          %p377 = pneg %p248
        $region50: #{_lambda_.1} parent=31 // pred_check_branch
          %379 = sbr.rel (%p377) target = $region52
        $region51: #{_lambda_.1} parent=31 // pred_region
          %v380 = vld [vmem:[%s246] sm:$0xff]
          %v381 = vld [vmem:[%s246 + $0x8] sm:$0xff]
          %v382 = vrsqrt.pop %v380
          %v383 = vmul.f32 %v380, %v382
          %vm384 = vcmp.eq.f32.partialorder %v380, inf
          %v385 = vsel %vm384, %v380, %v383
          %vm386 = vcmp.eq.f32.partialorder %v380, 0.0
          %v387 = vand.u32 %v380, 2147483648
          %v388 = vsel %vm386, %v387, %v385
          %v389 = vrsqrt.pop %v381
          %v390 = vmul.f32 %v381, %v389
          %vm391 = vcmp.eq.f32.partialorder %v381, inf
          %v392 = vsel %vm391, %v381, %v390
          %vm393 = vcmp.eq.f32.partialorder %v381, 0.0
          %v394 = vand.u32 %v381, 2147483648
          %v395 = vsel %vm393, %v394, %v392
          %396 = vst.msk [vmem:[%s246] sm:$0xff] %vm374, %v388
          %397 = vst.msk [vmem:[%s246 + $0x8] sm:$0xff] %vm374, %v395
        $region52: #{_lambda_.1} parent=31 // pred_fallthru
          _
        %s398 = smul.u32 2, %s22
        %p399 = scmp.lt.s32.totalorder %s398, 3
        %s400 = scalar_select %p399, %s398, 3
        %s401 = smul.addr %s400, 8
        %s402 = scalar_lea.vmem %s3, %s401
        // Predicated region
        $region53: #{_lambda_.1} parent=31 // pred_check
          %p403 = pneg %p126
        $region54: #{_lambda_.1} parent=31 // pred_check_branch
          %405 = sbr.rel (%p403) target = $region56
        $region55: #{_lambda_.1} parent=31 // pred_region
          %s406 = smul.u32 2, %s22
        $region56: #{_lambda_.1} parent=31 // pred_fallthru
          _
      $region32: #{_lambda_.1} parent=5 // pred_fallthru
        _
      %p407 = scmp.le.s32.totalorder 2, %s13
      // Predicated region
      $region57: #{_lambda_.1} parent=5 // pred_check
        %p408 = pneg %p407
      $region58: #{_lambda_.1} parent=5 // pred_check_branch
        %410 = sbr.rel (%p408) target = $region60
      $region59: #{_lambda_.1} parent=5 // pred_region
        %s411 = ssub.s32 %s13, 2
        // Predicated region
        $region61: #{_lambda_.1} parent=59 // pred_check
          %p412 = pneg %p132
        $region62: #{_lambda_.1} parent=59 // pred_check_branch
          %414 = sbr.rel (%p412) target = $region64
        $region63: #{_lambda_.1} parent=59 // pred_region
          %s415 = smul.u32 2, %s24
          %p416 = scmp.lt.s32.totalorder %s415, 3
          %s417 = scalar_select %p416, %s415, 3
          %s418 = smul.addr %s417, 8
          %s419 = scalar_lea.vmem %s3, %s418
        $region64: #{_lambda_.1} parent=59 // pred_fallthru
          _
      $region60: #{_lambda_.1} parent=5 // pred_fallthru
        _
    $region6: #{_lambda_.1} parent=1 // loop_footer
      %s17 = sadd.s32 1, %s13
    $region7: #{_lambda_.1} parent=1 // loop_footer_branch
      %12 = sbr.rel target = $region3
    $region8: #{_lambda_.1} parent=1 // loop_exit
      _
    %420 = vsyncpa [#allocation3], 1
    %s421 = scalar_lea.sflag [#allocation3], 1
    %422 = vsyncpa %s421, 1
    %423 = vsyncpa [#allocation5], 1

</llo_original>
